<compile_context>
chip_gen: v5e
topology: v5e:2x2
jax: 0.10.0
libtpu: 0.0.40
codegen_flags: <defaults>
</compile_context>

<pallas_src>
import jax
import jax.numpy as jnp
import numpy as np
from jax import lax
from jax.experimental import pallas as pl
from jax.experimental.pallas import tpu as pltpu

TAU = 2.0
V_TH = 1.0
BN_EPS = 1e-5


def _fold_params(params):
    """Fold conv bias + inference BN into per-output-channel weight/bias.

    PyTorch layout: conv weight (Cout, Cin, 1, 1) squeezed to (Cout, Cin).
    Returns bf16 folded weights (matmul operands) and f32 folded biases (Cout, 1).
    """
    (w1, b1, g1, be1, rm1, rv1, w2, b2, g2, be2, rm2, rv2) = params
    s1 = g1 / jnp.sqrt(rv1 + BN_EPS)
    s2 = g2 / jnp.sqrt(rv2 + BN_EPS)
    w1f = (w1 * s1[:, None]).astype(jnp.bfloat16)                      # (Chid, Cin)
    b1f = (s1 * (b1 - rm1) + be1).reshape(-1, 1).astype(jnp.float32)   # (Chid, 1)
    w2f = (w2 * s2[:, None]).astype(jnp.bfloat16)                      # (Cout, Chid)
    b2f = (s2 * (b2 - rm2) + be2).reshape(-1, 1).astype(jnp.float32)   # (Cout, 1)
    return w1f, b1f, w2f, b2f


def mlp_kernel(x_ref, w1_ref, b1_ref, w2_ref, b2_ref, o_ref):
    """One (batch b, spatial tile n) slab; the full T sequence loops in-kernel.

    x_ref : (T, Cin, tn)  bf16       o_ref : (T, Cout, tn) f32
    w1_ref: (Chid, Cin)   bf16       b1_ref: (Chid, 1) f32
    w2_ref: (Cout, Chid)  bf16       b2_ref: (Cout, 1) f32
    LIF membranes are carried in registers through the fori_loop.
    """
    T, Cin, tn = x_ref.shape
    Chid = w1_ref.shape[0]
    Cout = w2_ref.shape[0]

    # Hoist weight loads and bias broadcasts out of the timestep loop
    # (broadcast_in_dim is not CSE'd by JAX).
    w1 = w1_ref[...]
    w2 = w2_ref[...]
    b1 = jnp.broadcast_to(b1_ref[...], (Chid, tn))
    b2 = jnp.broadcast_to(b2_ref[...], (Cout, tn))
    inv_tau = jnp.float32(1.0 / TAU)

    def t_step(t, carry):
        v1, v2 = carry
        x = x_ref[t].astype(jnp.float32)                  # (Cin, tn)

        # ---- fc1_lif (f32 membrane, hard reset) ----
        v1 = v1 + (x - v1) * inv_tau
        m1 = v1 >= V_TH
        spk1 = m1.astype(jnp.bfloat16)                    # binary -> exact in bf16
        v1 = jnp.where(m1, 0.0, v1)

        # ---- fc1_conv (1x1) + fc1_bn folded: bf16 MXU, f32 accumulate ----
        h = jnp.dot(w1, spk1, preferred_element_type=jnp.float32) + b1

        # ---- fc2_lif ----
        v2 = v2 + (h - v2) * inv_tau
        m2 = v2 >= V_TH
        spk2 = m2.astype(jnp.bfloat16)
        v2 = jnp.where(m2, 0.0, v2)

        # ---- fc2_conv + fc2_bn folded ----
        y = jnp.dot(w2, spk2, preferred_element_type=jnp.float32) + b2

        o_ref[t] = y                                      # lane-dense (Cout, tn) store
        return (v1, v2)

    v1_0 = jnp.zeros((Cin, tn), jnp.float32)
    v2_0 = jnp.zeros((Chid, tn), jnp.float32)
    # Bounded unroll: keeps LLO scheduling visibility without spilling the
    # register-carried membranes when T or tn is large.
    lax.fori_loop(0, T, t_step, (v1_0, v2_0), unroll=min(T, 4))


def _pick_tn(HW, B, T, Cin, Cout, budget_bytes=24 * 1024 * 1024):
    """Largest lane-dense (128-multiple) spatial tile that
      * divides H*W,
      * keeps the double-buffered per-step block footprint under budget
        (conservative for v7x's 64 MiB VMEM),
      * and leaves >=2 total grid steps so both v7x TensorCores get work.
    """
    def footprint(tn):
        # double-buffered input (bf16) + output (f32) blocks for the whole T span
        return 2 * T * tn * (Cin * 2 + Cout * 4)

    cands = [c for c in (1024, 512, 256, 128) if HW % c == 0]
    if not cands:
        # TODO(synk): HW not 128-aligned -> full-dim block (masked partial stores).
        return HW
    fitting = [c for c in cands if footprint(c) <= budget_bytes] or [cands[-1]]
    for c in fitting:
        if B * (HW // c) >= 2:
            return c
    return fitting[-1]


def mlp_forward(x, params, *, tn=None):
    """x: (T, B, Cin, H, W), PyTorch NCHW per timestep. Returns same layout (f32)."""
    w1f, b1f, w2f, b2f = _fold_params(params)
    T, B, Cin, H, W = x.shape
    Chid = w1f.shape[0]
    Cout = w2f.shape[0]
    HW = H * W

    if tn is None:
        tn = _pick_tn(HW, B, T, Cin, Cout)
    assert HW % tn == 0, (HW, tn)

    # Free reshape only (no HBM transpose); bf16 halves the input DMA bytes.
    # In the full model the upstream layer should emit bf16 so this cast fuses.
    xk = x.reshape(T, B, Cin, HW)
    if xk.dtype != jnp.bfloat16:
        xk = xk.astype(jnp.bfloat16)

    grid_spec = pltpu.PrefetchScalarGridSpec(
        num_scalar_prefetch=0,
        grid=(B, HW // tn),
        in_specs=[
            # B dim squeezed out of the kernel block -> kernel sees (T, Cin, tn).
            pl.BlockSpec((T, None, Cin, tn), lambda b, n: (0, b, 0, n)),
            pl.BlockSpec((Chid, Cin), lambda b, n: (0, 0)),
            pl.BlockSpec((Chid, 1), lambda b, n: (0, 0)),
            pl.BlockSpec((Cout, Chid), lambda b, n: (0, 0)),
            pl.BlockSpec((Cout, 1), lambda b, n: (0, 0)),
        ],
        out_specs=pl.BlockSpec((T, None, Cout, tn), lambda b, n: (0, b, 0, n)),
        scratch_shapes=[],
    )

    out = pl.pallas_call(
        mlp_kernel,
        out_shape=jax.ShapeDtypeStruct((T, B, Cout, HW), jnp.float32),
        grid_spec=grid_spec,
        compiler_params=pltpu.CompilerParams(
            # (b, n) slabs are independent -> both axes parallel (v7x megacore);
            # the sequential LIF carry lives in the in-kernel T loop.
            dimension_semantics=("parallel", "parallel"),
        ),
    )(xk, w1f, b1f, w2f, b2f)

    # Free reshape back to (T, B, Cout, H, W).
    return out.reshape(T, B, Cout, H, W)


def mlp_reference(x, params):
    """Pure-JAX reference with identical casts (bf16 input / bf16 folded weights),
    so hard-threshold spike decisions match the kernel bit-for-bit in practice."""
    w1f, b1f, w2f, b2f = _fold_params(params)
    T, B, Cin, H, W = x.shape
    HW = H * W
    Chid = w1f.shape[0]
    Cout = w2f.shape[0]
    xk = x.reshape(T, B, Cin, HW).astype(jnp.bfloat16)

    def step(carry, xt):
        v1, v2 = carry
        xt = xt.astype(jnp.float32)
        v1 = v1 + (xt - v1) * (1.0 / TAU)
        m1 = v1 >= V_TH
        s1 = m1.astype(jnp.bfloat16)
        v1 = jnp.where(m1, 0.0, v1)
        h = jnp.einsum("oc,bcn->bon", w1f, s1,
                       preferred_element_type=jnp.float32) + b1f
        v2 = v2 + (h - v2) * (1.0 / TAU)
        m2 = v2 >= V_TH
        s2 = m2.astype(jnp.bfloat16)
        v2 = jnp.where(m2, 0.0, v2)
        y = jnp.einsum("oc,bcn->bon", w2f, s2,
                       preferred_element_type=jnp.float32) + b2f
        return (v1, v2), y

    init = (jnp.zeros((B, Cin, HW), jnp.float32),
            jnp.zeros((B, Chid, HW), jnp.float32))
    _, ys = lax.scan(step, init, xk)
    return ys.reshape(T, B, Cout, H, W)


if __name__ == "__main__":
    T, B, C, H, W = 4, 2, 16, 16, 16     # in_features = out_features = C
    HIDDEN = 32                          # hidden_features
    HW = H * W                           # 256 -> tn=128 gives a (2, 2) grid

    key = jax.random.PRNGKey(0)
    ks = jax.random.split(key, 16)

    x = 3.0 * jax.random.normal(ks[0], (T, B, C, H, W), jnp.float32) + 0.5

    # PyTorch 1x1-conv weight layout (out_channels, in_channels).
    w1 = jax.random.normal(ks[1], (HIDDEN, C), jnp.float32) / np.sqrt(C)
    b1 = 0.1 * jax.random.normal(ks[2], (HIDDEN,), jnp.float32)
    g1 = 1.0 + 0.1 * jax.random.normal(ks[3], (HIDDEN,), jnp.float32)
    be1 = 0.1 * jax.random.normal(ks[4], (HIDDEN,), jnp.float32)
    rm1 = 0.1 * jax.random.normal(ks[5], (HIDDEN,), jnp.float32)
    rv1 = 0.5 + jnp.abs(jax.random.normal(ks[6], (HIDDEN,), jnp.float32))

    w2 = jax.random.normal(ks[7], (C, HIDDEN), jnp.float32) / np.sqrt(HIDDEN)
    b2 = 0.1 * jax.random.normal(ks[8], (C,), jnp.float32)
    g2 = 1.0 + 0.1 * jax.random.normal(ks[9], (C,), jnp.float32)
    be2 = 0.1 * jax.random.normal(ks[10], (C,), jnp.float32)
    rm2 = 0.1 * jax.random.normal(ks[11], (C,), jnp.float32)
    rv2 = 0.5 + jnp.abs(jax.random.normal(ks[12], (C,), jnp.float32))

    params = (w1, b1, g1, be1, rm1, rv1, w2, b2, g2, be2, rm2, rv2)

    out = mlp_forward(x, params, tn=128)   # grid (B=2, HW/tn=2): exercises tiling
    out = jax.block_until_ready(out)
    assert out.shape == (T, B, C, H, W), out.shape

    ref = jax.block_until_ready(mlp_reference(x, params))

    out_np = np.asarray(out)
    ref_np = np.asarray(ref)
    assert np.isfinite(out_np).all()
    # Hard thresholding is discontinuous; allow a vanishingly small fraction of
    # single-spike flips (in practice 0 since kernel and reference share the
    # exact same casts and f32-accumulated matmuls).
    mismatch_frac = float(np.mean(np.abs(out_np - ref_np) > 1e-3))
    assert mismatch_frac < 0.01, f"mismatch fraction too high: {mismatch_frac}"

    print("KERNEL_OK")
</pallas_src>

<mosaic_0001>
module attributes {stable_mosaic.version = 11 : i64} {
  func.func @mlp_kernel(%arg0: i32, %arg1: i32, %arg2: memref<4x1x16x128xbf16, #tpu.memory_space<vmem>>, %arg3: memref<32x16xbf16, #tpu.memory_space<vmem>>, %arg4: memref<32x1xf32, #tpu.memory_space<vmem>>, %arg5: memref<16x32xbf16, #tpu.memory_space<vmem>>, %arg6: memref<16x1xf32, #tpu.memory_space<vmem>>, %arg7: memref<4x1x16x128xf32, #tpu.memory_space<vmem>>) attributes {dimension_semantics = [#tpu.dimension_semantics<parallel>, #tpu.dimension_semantics<parallel>], iteration_bounds = array<i64: 2, 2>, scalar_prefetch = 0 : i64, scratch_operands = 0 : i64, tpu.core_type = #tpu.core_type<tc>, window_params = [{transform_indices = @transform_0, window_bounds = array<i64: 4, 1, 16, 128>}, {pipeline_mode = #tpu.pipeline_mode<synchronous>, transform_indices = @transform_1, window_bounds = array<i64: 32, 16>}, {pipeline_mode = #tpu.pipeline_mode<synchronous>, transform_indices = @transform_2, window_bounds = array<i64: 32, 1>}, {pipeline_mode = #tpu.pipeline_mode<synchronous>, transform_indices = @transform_3, window_bounds = array<i64: 16, 32>}, {pipeline_mode = #tpu.pipeline_mode<synchronous>, transform_indices = @transform_4, window_bounds = array<i64: 16, 1>}, {transform_indices = @transform_5, window_bounds = array<i64: 4, 1, 16, 128>}]} {
    %c0 = arith.constant 0 : index
    %c0_0 = arith.constant 0 : index
    %0 = vector.load %arg3[%c0, %c0_0] : memref<32x16xbf16, #tpu.memory_space<vmem>>, vector<32x16xbf16>
    %c0_1 = arith.constant 0 : index
    %c0_2 = arith.constant 0 : index
    %1 = vector.load %arg5[%c0_1, %c0_2] : memref<16x32xbf16, #tpu.memory_space<vmem>>, vector<16x32xbf16>
    %c0_3 = arith.constant 0 : index
    %c0_4 = arith.constant 0 : index
    %2 = vector.load %arg4[%c0_3, %c0_4] : memref<32x1xf32, #tpu.memory_space<vmem>>, vector<32x1xf32>
    %3 = vector.shape_cast %2 : vector<32x1xf32> to vector<32x1xf32>
    %4 = vector.broadcast %3 : vector<32x1xf32> to vector<32x128xf32>
    %c0_5 = arith.constant 0 : index
    %c0_6 = arith.constant 0 : index
    %5 = vector.load %arg6[%c0_5, %c0_6] : memref<16x1xf32, #tpu.memory_space<vmem>>, vector<16x1xf32>
    %6 = vector.shape_cast %5 : vector<16x1xf32> to vector<16x1xf32>
    %7 = vector.broadcast %6 : vector<16x1xf32> to vector<16x128xf32>
    %cst = arith.constant 0.000000e+00 : f32
    %8 = vector.broadcast %cst : f32 to vector<16x128xf32>
    %cst_7 = arith.constant 0.000000e+00 : f32
    %9 = vector.broadcast %cst_7 : f32 to vector<32x128xf32>
    %cst_8 = arith.constant 5.000000e-01 : f32
    %c0_i32 = arith.constant 0 : i32
    %10 = arith.index_cast %c0_i32 : i32 to index
    %c0_9 = arith.constant 0 : index
    %c0_10 = arith.constant 0 : index
    %c0_11 = arith.constant 0 : index
    %11 = vector.load %arg2[%10, %c0_9, %c0_10, %c0_11] : memref<4x1x16x128xbf16, #tpu.memory_space<vmem>>, vector<1x1x16x128xbf16>
    %12 = vector.shape_cast %11 : vector<1x1x16x128xbf16> to vector<16x128xbf16>
    %13 = arith.extf %12 : vector<16x128xbf16> to vector<16x128xf32>
    %14 = arith.subf %13, %8 : vector<16x128xf32>
    %15 = vector.broadcast %cst_8 : f32 to vector<16x128xf32>
    %16 = arith.mulf %14, %15 : vector<16x128xf32>
    %17 = arith.addf %8, %16 : vector<16x128xf32>
    %cst_12 = arith.constant 1.000000e+00 : f32
    %18 = vector.broadcast %cst_12 : f32 to vector<16x128xf32>
    %19 = arith.cmpf oge, %17, %18 : vector<16x128xf32>
    %20 = arith.extui %19 : vector<16x128xi1> to vector<16x128xi32>
    %21 = arith.sitofp %20 : vector<16x128xi32> to vector<16x128xf32>
    %22 = arith.truncf %21 : vector<16x128xf32> to vector<16x128xbf16>
    %cst_13 = arith.constant 0.000000e+00 : f32
    %23 = vector.broadcast %cst_13 : f32 to vector<16x128xf32>
    %24 = arith.select %19, %23, %17 : vector<16x128xi1>, vector<16x128xf32>
    %cst_14 = arith.constant dense<0.000000e+00> : vector<32x128xf32>
    %25 = tpu.matmul %0, %22, %cst_14 {dimension_numbers = #tpu.dot_dimension_numbers<[1], [0], [0], [1], [0, 0, 1, 1], [], []>} : vector<32x16xbf16>, vector<16x128xbf16>, vector<32x128xf32> -> vector<32x128xf32>
    %26 = arith.addf %25, %4 : vector<32x128xf32>
    %27 = arith.subf %26, %9 : vector<32x128xf32>
    %28 = vector.broadcast %cst_8 : f32 to vector<32x128xf32>
    %29 = arith.mulf %27, %28 : vector<32x128xf32>
    %30 = arith.addf %9, %29 : vector<32x128xf32>
    %cst_15 = arith.constant 1.000000e+00 : f32
    %31 = vector.broadcast %cst_15 : f32 to vector<32x128xf32>
    %32 = arith.cmpf oge, %30, %31 : vector<32x128xf32>
    %33 = arith.extui %32 : vector<32x128xi1> to vector<32x128xi32>
    %34 = arith.sitofp %33 : vector<32x128xi32> to vector<32x128xf32>
    %35 = arith.truncf %34 : vector<32x128xf32> to vector<32x128xbf16>
    %cst_16 = arith.constant 0.000000e+00 : f32
    %36 = vector.broadcast %cst_16 : f32 to vector<32x128xf32>
    %37 = arith.select %32, %36, %30 : vector<32x128xi1>, vector<32x128xf32>
    %cst_17 = arith.constant dense<0.000000e+00> : vector<16x128xf32>
    %38 = tpu.matmul %1, %35, %cst_17 {dimension_numbers = #tpu.dot_dimension_numbers<[1], [0], [0], [1], [0, 0, 1, 1], [], []>} : vector<16x32xbf16>, vector<32x128xbf16>, vector<16x128xf32> -> vector<16x128xf32>
    %39 = arith.addf %38, %7 : vector<16x128xf32>
    %40 = arith.index_cast %c0_i32 : i32 to index
    %c0_18 = arith.constant 0 : index
    %c0_19 = arith.constant 0 : index
    %c0_20 = arith.constant 0 : index
    %41 = vector.load %arg7[%40, %c0_18, %c0_19, %c0_20] : memref<4x1x16x128xf32, #tpu.memory_space<vmem>>, vector<1x1x16x128xf32>
    %42 = vector.shape_cast %41 : vector<1x1x16x128xf32> to vector<16x128xf32>
    %43 = vector.shape_cast %39 : vector<16x128xf32> to vector<1x1x16x128xf32>
    tpu.vector_store %arg7[%40, %c0_18, %c0_19, %c0_20], %43 {strides = array<i32>} : memref<4x1x16x128xf32, #tpu.memory_space<vmem>>, vector<1x1x16x128xf32>,
    %c1_i32 = arith.constant 1 : i32
    %44 = arith.index_cast %c1_i32 : i32 to index
    %c0_21 = arith.constant 0 : index
    %c0_22 = arith.constant 0 : index
    %c0_23 = arith.constant 0 : index
    %45 = vector.load %arg2[%44, %c0_21, %c0_22, %c0_23] : memref<4x1x16x128xbf16, #tpu.memory_space<vmem>>, vector<1x1x16x128xbf16>
    %46 = vector.shape_cast %45 : vector<1x1x16x128xbf16> to vector<16x128xbf16>
    %47 = arith.extf %46 : vector<16x128xbf16> to vector<16x128xf32>
    %48 = arith.subf %47, %24 : vector<16x128xf32>
    %49 = vector.broadcast %cst_8 : f32 to vector<16x128xf32>
    %50 = arith.mulf %48, %49 : vector<16x128xf32>
    %51 = arith.addf %24, %50 : vector<16x128xf32>
    %cst_24 = arith.constant 1.000000e+00 : f32
    %52 = vector.broadcast %cst_24 : f32 to vector<16x128xf32>
    %53 = arith.cmpf oge, %51, %52 : vector<16x128xf32>
    %54 = arith.extui %53 : vector<16x128xi1> to vector<16x128xi32>
    %55 = arith.sitofp %54 : vector<16x128xi32> to vector<16x128xf32>
    %56 = arith.truncf %55 : vector<16x128xf32> to vector<16x128xbf16>
    %cst_25 = arith.constant 0.000000e+00 : f32
    %57 = vector.broadcast %cst_25 : f32 to vector<16x128xf32>
    %58 = arith.select %53, %57, %51 : vector<16x128xi1>, vector<16x128xf32>
    %cst_26 = arith.constant dense<0.000000e+00> : vector<32x128xf32>
    %59 = tpu.matmul %0, %56, %cst_26 {dimension_numbers = #tpu.dot_dimension_numbers<[1], [0], [0], [1], [0, 0, 1, 1], [], []>} : vector<32x16xbf16>, vector<16x128xbf16>, vector<32x128xf32> -> vector<32x128xf32>
    %60 = arith.addf %59, %4 : vector<32x128xf32>
    %61 = arith.subf %60, %37 : vector<32x128xf32>
    %62 = vector.broadcast %cst_8 : f32 to vector<32x128xf32>
    %63 = arith.mulf %61, %62 : vector<32x128xf32>
    %64 = arith.addf %37, %63 : vector<32x128xf32>
    %cst_27 = arith.constant 1.000000e+00 : f32
    %65 = vector.broadcast %cst_27 : f32 to vector<32x128xf32>
    %66 = arith.cmpf oge, %64, %65 : vector<32x128xf32>
    %67 = arith.extui %66 : vector<32x128xi1> to vector<32x128xi32>
    %68 = arith.sitofp %67 : vector<32x128xi32> to vector<32x128xf32>
    %69 = arith.truncf %68 : vector<32x128xf32> to vector<32x128xbf16>
    %cst_28 = arith.constant 0.000000e+00 : f32
    %70 = vector.broadcast %cst_28 : f32 to vector<32x128xf32>
    %71 = arith.select %66, %70, %64 : vector<32x128xi1>, vector<32x128xf32>
    %cst_29 = arith.constant dense<0.000000e+00> : vector<16x128xf32>
    %72 = tpu.matmul %1, %69, %cst_29 {dimension_numbers = #tpu.dot_dimension_numbers<[1], [0], [0], [1], [0, 0, 1, 1], [], []>} : vector<16x32xbf16>, vector<32x128xbf16>, vector<16x128xf32> -> vector<16x128xf32>
    %73 = arith.addf %72, %7 : vector<16x128xf32>
    %74 = arith.index_cast %c1_i32 : i32 to index
    %c0_30 = arith.constant 0 : index
    %c0_31 = arith.constant 0 : index
    %c0_32 = arith.constant 0 : index
    %75 = vector.load %arg7[%74, %c0_30, %c0_31, %c0_32] : memref<4x1x16x128xf32, #tpu.memory_space<vmem>>, vector<1x1x16x128xf32>
    %76 = vector.shape_cast %75 : vector<1x1x16x128xf32> to vector<16x128xf32>
    %77 = vector.shape_cast %73 : vector<16x128xf32> to vector<1x1x16x128xf32>
    tpu.vector_store %arg7[%74, %c0_30, %c0_31, %c0_32], %77 {strides = array<i32>} : memref<4x1x16x128xf32, #tpu.memory_space<vmem>>, vector<1x1x16x128xf32>,
    %c2_i32 = arith.constant 2 : i32
    %78 = arith.index_cast %c2_i32 : i32 to index
    %c0_33 = arith.constant 0 : index
    %c0_34 = arith.constant 0 : index
    %c0_35 = arith.constant 0 : index
    %79 = vector.load %arg2[%78, %c0_33, %c0_34, %c0_35] : memref<4x1x16x128xbf16, #tpu.memory_space<vmem>>, vector<1x1x16x128xbf16>
    %80 = vector.shape_cast %79 : vector<1x1x16x128xbf16> to vector<16x128xbf16>
    %81 = arith.extf %80 : vector<16x128xbf16> to vector<16x128xf32>
    %82 = arith.subf %81, %58 : vector<16x128xf32>
    %83 = vector.broadcast %cst_8 : f32 to vector<16x128xf32>
    %84 = arith.mulf %82, %83 : vector<16x128xf32>
    %85 = arith.addf %58, %84 : vector<16x128xf32>
    %cst_36 = arith.constant 1.000000e+00 : f32
    %86 = vector.broadcast %cst_36 : f32 to vector<16x128xf32>
    %87 = arith.cmpf oge, %85, %86 : vector<16x128xf32>
    %88 = arith.extui %87 : vector<16x128xi1> to vector<16x128xi32>
    %89 = arith.sitofp %88 : vector<16x128xi32> to vector<16x128xf32>
    %90 = arith.truncf %89 : vector<16x128xf32> to vector<16x128xbf16>
    %cst_37 = arith.constant 0.000000e+00 : f32
    %91 = vector.broadcast %cst_37 : f32 to vector<16x128xf32>
    %92 = arith.select %87, %91, %85 : vector<16x128xi1>, vector<16x128xf32>
    %cst_38 = arith.constant dense<0.000000e+00> : vector<32x128xf32>
    %93 = tpu.matmul %0, %90, %cst_38 {dimension_numbers = #tpu.dot_dimension_numbers<[1], [0], [0], [1], [0, 0, 1, 1], [], []>} : vector<32x16xbf16>, vector<16x128xbf16>, vector<32x128xf32> -> vector<32x128xf32>
    %94 = arith.addf %93, %4 : vector<32x128xf32>
    %95 = arith.subf %94, %71 : vector<32x128xf32>
    %96 = vector.broadcast %cst_8 : f32 to vector<32x128xf32>
    %97 = arith.mulf %95, %96 : vector<32x128xf32>
    %98 = arith.addf %71, %97 : vector<32x128xf32>
    %cst_39 = arith.constant 1.000000e+00 : f32
    %99 = vector.broadcast %cst_39 : f32 to vector<32x128xf32>
    %100 = arith.cmpf oge, %98, %99 : vector<32x128xf32>
    %101 = arith.extui %100 : vector<32x128xi1> to vector<32x128xi32>
    %102 = arith.sitofp %101 : vector<32x128xi32> to vector<32x128xf32>
    %103 = arith.truncf %102 : vector<32x128xf32> to vector<32x128xbf16>
    %cst_40 = arith.constant 0.000000e+00 : f32
    %104 = vector.broadcast %cst_40 : f32 to vector<32x128xf32>
    %105 = arith.select %100, %104, %98 : vector<32x128xi1>, vector<32x128xf32>
    %cst_41 = arith.constant dense<0.000000e+00> : vector<16x128xf32>
    %106 = tpu.matmul %1, %103, %cst_41 {dimension_numbers = #tpu.dot_dimension_numbers<[1], [0], [0], [1], [0, 0, 1, 1], [], []>} : vector<16x32xbf16>, vector<32x128xbf16>, vector<16x128xf32> -> vector<16x128xf32>
    %107 = arith.addf %106, %7 : vector<16x128xf32>
    %108 = arith.index_cast %c2_i32 : i32 to index
    %c0_42 = arith.constant 0 : index
    %c0_43 = arith.constant 0 : index
    %c0_44 = arith.constant 0 : index
    %109 = vector.load %arg7[%108, %c0_42, %c0_43, %c0_44] : memref<4x1x16x128xf32, #tpu.memory_space<vmem>>, vector<1x1x16x128xf32>
    %110 = vector.shape_cast %109 : vector<1x1x16x128xf32> to vector<16x128xf32>
    %111 = vector.shape_cast %107 : vector<16x128xf32> to vector<1x1x16x128xf32>
    tpu.vector_store %arg7[%108, %c0_42, %c0_43, %c0_44], %111 {strides = array<i32>} : memref<4x1x16x128xf32, #tpu.memory_space<vmem>>, vector<1x1x16x128xf32>,
    %c3_i32 = arith.constant 3 : i32
    %112 = arith.index_cast %c3_i32 : i32 to index
    %c0_45 = arith.constant 0 : index
    %c0_46 = arith.constant 0 : index
    %c0_47 = arith.constant 0 : index
    %113 = vector.load %arg2[%112, %c0_45, %c0_46, %c0_47] : memref<4x1x16x128xbf16, #tpu.memory_space<vmem>>, vector<1x1x16x128xbf16>
    %114 = vector.shape_cast %113 : vector<1x1x16x128xbf16> to vector<16x128xbf16>
    %115 = arith.extf %114 : vector<16x128xbf16> to vector<16x128xf32>
    %116 = arith.subf %115, %92 : vector<16x128xf32>
    %117 = vector.broadcast %cst_8 : f32 to vector<16x128xf32>
    %118 = arith.mulf %116, %117 : vector<16x128xf32>
    %119 = arith.addf %92, %118 : vector<16x128xf32>
    %cst_48 = arith.constant 1.000000e+00 : f32
    %120 = vector.broadcast %cst_48 : f32 to vector<16x128xf32>
    %121 = arith.cmpf oge, %119, %120 : vector<16x128xf32>
    %122 = arith.extui %121 : vector<16x128xi1> to vector<16x128xi32>
    %123 = arith.sitofp %122 : vector<16x128xi32> to vector<16x128xf32>
    %124 = arith.truncf %123 : vector<16x128xf32> to vector<16x128xbf16>
    %cst_49 = arith.constant 0.000000e+00 : f32
    %125 = vector.broadcast %cst_49 : f32 to vector<16x128xf32>
    %126 = arith.select %121, %125, %119 : vector<16x128xi1>, vector<16x128xf32>
    %cst_50 = arith.constant dense<0.000000e+00> : vector<32x128xf32>
    %127 = tpu.matmul %0, %124, %cst_50 {dimension_numbers = #tpu.dot_dimension_numbers<[1], [0], [0], [1], [0, 0, 1, 1], [], []>} : vector<32x16xbf16>, vector<16x128xbf16>, vector<32x128xf32> -> vector<32x128xf32>
    %128 = arith.addf %127, %4 : vector<32x128xf32>
    %129 = arith.subf %128, %105 : vector<32x128xf32>
    %130 = vector.broadcast %cst_8 : f32 to vector<32x128xf32>
    %131 = arith.mulf %129, %130 : vector<32x128xf32>
    %132 = arith.addf %105, %131 : vector<32x128xf32>
    %cst_51 = arith.constant 1.000000e+00 : f32
    %133 = vector.broadcast %cst_51 : f32 to vector<32x128xf32>
    %134 = arith.cmpf oge, %132, %133 : vector<32x128xf32>
    %135 = arith.extui %134 : vector<32x128xi1> to vector<32x128xi32>
    %136 = arith.sitofp %135 : vector<32x128xi32> to vector<32x128xf32>
    %137 = arith.truncf %136 : vector<32x128xf32> to vector<32x128xbf16>
    %cst_52 = arith.constant 0.000000e+00 : f32
    %138 = vector.broadcast %cst_52 : f32 to vector<32x128xf32>
    %139 = arith.select %134, %138, %132 : vector<32x128xi1>, vector<32x128xf32>
    %cst_53 = arith.constant dense<0.000000e+00> : vector<16x128xf32>
    %140 = tpu.matmul %1, %137, %cst_53 {dimension_numbers = #tpu.dot_dimension_numbers<[1], [0], [0], [1], [0, 0, 1, 1], [], []>} : vector<16x32xbf16>, vector<32x128xbf16>, vector<16x128xf32> -> vector<16x128xf32>
    %141 = arith.addf %140, %7 : vector<16x128xf32>
    %142 = arith.index_cast %c3_i32 : i32 to index
    %c0_54 = arith.constant 0 : index
    %c0_55 = arith.constant 0 : index
    %c0_56 = arith.constant 0 : index
    %143 = vector.load %arg7[%142, %c0_54, %c0_55, %c0_56] : memref<4x1x16x128xf32, #tpu.memory_space<vmem>>, vector<1x1x16x128xf32>
    %144 = vector.shape_cast %143 : vector<1x1x16x128xf32> to vector<16x128xf32>
    %145 = vector.shape_cast %141 : vector<16x128xf32> to vector<1x1x16x128xf32>
    tpu.vector_store %arg7[%142, %c0_54, %c0_55, %c0_56], %145 {strides = array<i32>} : memref<4x1x16x128xf32, #tpu.memory_space<vmem>>, vector<1x1x16x128xf32>,
    %c4_i32 = arith.constant 4 : i32
    return
  }
  func.func @transform_0(%arg0: i32, %arg1: i32) -> (i32, i32, i32, i32) {
    %c0_i32 = arith.constant 0 : i32
    %c0_i32_0 = arith.constant 0 : i32
    %c0_i32_1 = arith.constant 0 : i32
    return %c0_i32, %arg0, %c0_i32_0, %arg1 : i32, i32, i32, i32
  }
  func.func @transform_1(%arg0: i32, %arg1: i32) -> (i32, i32) {
    %c0_i32 = arith.constant 0 : i32
    %c0_i32_0 = arith.constant 0 : i32
    %c0_i32_1 = arith.constant 0 : i32
    return %c0_i32, %c0_i32_0 : i32, i32
  }
  func.func @transform_2(%arg0: i32, %arg1: i32) -> (i32, i32) {
    %c0_i32 = arith.constant 0 : i32
    %c0_i32_0 = arith.constant 0 : i32
    %c0_i32_1 = arith.constant 0 : i32
    return %c0_i32, %c0_i32_0 : i32, i32
  }
  func.func @transform_3(%arg0: i32, %arg1: i32) -> (i32, i32) {
    %c0_i32 = arith.constant 0 : i32
    %c0_i32_0 = arith.constant 0 : i32
    %c0_i32_1 = arith.constant 0 : i32
    return %c0_i32, %c0_i32_0 : i32, i32
  }
  func.func @transform_4(%arg0: i32, %arg1: i32) -> (i32, i32) {
    %c0_i32 = arith.constant 0 : i32
    %c0_i32_0 = arith.constant 0 : i32
    %c0_i32_1 = arith.constant 0 : i32
    return %c0_i32, %c0_i32_0 : i32, i32
  }
  func.func @transform_5(%arg0: i32, %arg1: i32) -> (i32, i32, i32, i32) {
    %c0_i32 = arith.constant 0 : i32
    %c0_i32_0 = arith.constant 0 : i32
    %c0_i32_1 = arith.constant 0 : i32
    return %c0_i32, %arg0, %c0_i32_0, %arg1 : i32, i32, i32, i32
  }
}

</mosaic_0001>

<llo_original>
// kernel: tpu_custom_call.1
$region0: #{tpu_custom_call.1}
  #allocation0 [shape = 'u32[]', space=smem, size = 0x4, offset = 0x4, fixed_abs, tag = 'smem constant byte address 0x4 - core index']
  #allocation1 [shape = 'u32[72,128]{1,0:T(1,128)}', space=vmem, size = 0x9000, scoped, tag = 'internal scratch']
  #allocation6 [shape = 's32[]', space=sflag, size = 0x4, offset = 0, fixed_abs, tag = 'sflag constant byte address 0x0 - dummy sync flag']
  #allocation8 [shape = 's32[]', space=sflag, size = 0x4, offset = 0, fixed_abs, tag = 'sflag constant byte address 0x0 - dummy sync flag']
  %s0 = inlined_call_operand.hbm [shape: bf16[4,2,16,256], index: 0, kind: input, shape index: {}]
  %s1 = inlined_call_operand.vmem [shape: bf16[32,16], index: 1, kind: input, shape index: {}]
  %s2 = inlined_call_operand.vmem [shape: f32[32,1], index: 2, kind: input, shape index: {}]
  %s3 = inlined_call_operand.vmem [shape: bf16[16,32], index: 3, kind: input, shape index: {}]
  %s4 = inlined_call_operand.vmem [shape: f32[16,1], index: 4, kind: input, shape index: {}]
  %s5 = inlined_call_operand.hbm [shape: f32[4,2,16,256], index: 5, kind: output, shape index: {}]
  %s6 = sld [smem:[#allocation0]]
  $region57: #{tpu_custom_call.1} parent=0
    _
  %s8 = ssub.s32 1, %s6
  %s9 = scalar_select 0, %s8, %s6
  $region1: #{tpu_custom_call.1} parent=0
    #allocation2 [shape = 'u8[32768]{0}', space=vmem, size = 0x8000, scoped, tag = 'input window, operand 0']
    #allocation3 [shape = 's32[2]{0}', space=sflag, size = 0x8, scoped, tag = 'scoped memory for tpu_custom_call.1']
    #allocation4 [shape = 's32[2]{0}', space=sflag, size = 0x8, scoped, tag = 'scoped memory for tpu_custom_call.1']
    #allocation5 [shape = 'u8[65536]{0}', space=vmem, size = 0x10000, scoped, tag = 'output window, operand 0']
    %10 = vsyncpa [#allocation3], 0
    %s11 = scalar_lea.sflag [#allocation3], 1
    %12 = vsyncpa %s11, 0
    %13 = vsyncpa [#allocation4], 0
    %s14 = scalar_lea.sflag [#allocation4], 1
    %15 = vsyncpa %s14, 0
    loop: start=0, step=1, limit=6
    $region2: #{tpu_custom_call.1} parent=1 // loop_pre_header
      _
    $region3: #{tpu_custom_call.1} parent=1 // loop_header
      %s17 = sphi 0, %s21
      %p18 = scmp.ge.s32.totalorder %s17, 6
      %s24 = sphi 0, %s36
      %s25 = sphi 0, %s32
      %s26 = sphi 0, %s24
      %s27 = sphi 0, %s25
      %s28 = sphi 0, %s26
      %s29 = sphi 0, %s27
      %s41 = sphi 0, %s43
      %s44 = sphi 0, %s41
      %s45 = sphi 0, %s44
      %s61 = sphi 0, %s45
      %s65 = sphi 0, %s65
      %s67 = sphi 0, %s65
      %s68 = sphi 0, %s67
      %s82 = sphi 0, %s68
      %s86 = sphi 0, %s86
      %s88 = sphi 0, %s86
      %s89 = sphi 0, %s88
      %s103 = sphi 0, %s89
      %s107 = sphi 0, %s107
      %s109 = sphi 0, %s107
      %s110 = sphi 0, %s109
      %s124 = sphi 0, %s110
      %s128 = sphi 0, %s128
      %s130 = sphi 0, %s128
      %s131 = sphi 0, %s130
      %s145 = sphi 0, %s131
      %s153 = sphi 0, %s155
      %s156 = sphi 0, %s153
      %s157 = sphi 0, %s156
      %s173 = sphi 0, %s157
    $region4: #{tpu_custom_call.1} parent=1 // loop_header_branch
      %20 = sbr.rel (%p18) target = $region8
    $region5: #{tpu_custom_call.1} parent=1 // loop_body
      %s22 = ssub.s32 %s17, 1
      %s23 = ssub.s32 %s17, 2
      %s30 = sadd.s32 1, %s25
      %p31 = scmp.ge.s32.totalorder %s30, 2
      %s32 = scalar_select %p31, 0, %s30
      %s33 = sadd.s32 1, %s24
      %s34 = scalar_select %p31, %s33, %s24
      %p35 = scmp.ge.s32.totalorder %s34, 2
      %s36 = scalar_select %p35, 0, %s34
      %s37 = ssub.s32 %s24, %s36
      %s38 = ssub.s32 %s25, %s32
      %s39 = sor.u32 %s37, %s38
      %p40 = scmp.eq.s32.totalorder %s39, 0
      %s42 = sadd.s32 %s41, 1
      %s43 = scalar_select %p40, %s41, %s42
      %p46 = pneg %p40
      %p47 = scmp.eq.s32.totalorder %s17, 3
      %p48 = por %p46, %p47
      %p49 = scmp.ne.s32.totalorder %s41, %s44
      %p50 = scmp.eq.s32.totalorder %s17, 0
      %p51 = por %p49, %p50
      %p52 = scmp.ne.s32.totalorder %s41, %s44
      %p53 = scmp.eq.s32.totalorder %s22, 3
      %p54 = por %p52, %p53
      %p55 = scmp.ne.s32.totalorder %s44, %s45
      %p56 = scmp.eq.s32.totalorder %s22, 0
      %p57 = por %p55, %p56
      %p58 = scmp.ne.s32.totalorder %s44, %s45
      %p59 = scmp.eq.s32.totalorder %s23, 3
      %p60 = por %p58, %p59
      %p62 = scmp.ne.s32.totalorder %s45, %s61
      %p63 = scmp.eq.s32.totalorder %s23, 0
      %p64 = por %p62, %p63
      %s66 = sadd.s32 %s65, 1
      %p69 = scmp.eq.s32.totalorder %s17, 3
      %p70 = scmp.ne.s32.totalorder %s65, %s67
      %p71 = scmp.eq.s32.totalorder %s17, 0
      %p72 = por %p70, %p71
      %p73 = scmp.ne.s32.totalorder %s65, %s67
      %p74 = scmp.eq.s32.totalorder %s22, 3
      %p75 = por %p73, %p74
      %p76 = scmp.ne.s32.totalorder %s67, %s68
      %p77 = scmp.eq.s32.totalorder %s22, 0
      %p78 = por %p76, %p77
      %p79 = scmp.ne.s32.totalorder %s67, %s68
      %p80 = scmp.eq.s32.totalorder %s23, 3
      %p81 = por %p79, %p80
      %p83 = scmp.ne.s32.totalorder %s68, %s82
      %p84 = scmp.eq.s32.totalorder %s23, 0
      %p85 = por %p83, %p84
      %s87 = sadd.s32 %s86, 1
      %p90 = scmp.eq.s32.totalorder %s17, 3
      %p91 = scmp.ne.s32.totalorder %s86, %s88
      %p92 = scmp.eq.s32.totalorder %s17, 0
      %p93 = por %p91, %p92
      %p94 = scmp.ne.s32.totalorder %s86, %s88
      %p95 = scmp.eq.s32.totalorder %s22, 3
      %p96 = por %p94, %p95
      %p97 = scmp.ne.s32.totalorder %s88, %s89
      %p98 = scmp.eq.s32.totalorder %s22, 0
      %p99 = por %p97, %p98
      %p100 = scmp.ne.s32.totalorder %s88, %s89
      %p101 = scmp.eq.s32.totalorder %s23, 3
      %p102 = por %p100, %p101
      %p104 = scmp.ne.s32.totalorder %s89, %s103
      %p105 = scmp.eq.s32.totalorder %s23, 0
      %p106 = por %p104, %p105
      %s108 = sadd.s32 %s107, 1
      %p111 = scmp.eq.s32.totalorder %s17, 3
      %p112 = scmp.ne.s32.totalorder %s107, %s109
      %p113 = scmp.eq.s32.totalorder %s17, 0
      %p114 = por %p112, %p113
      %p115 = scmp.ne.s32.totalorder %s107, %s109
      %p116 = scmp.eq.s32.totalorder %s22, 3
      %p117 = por %p115, %p116
      %p118 = scmp.ne.s32.totalorder %s109, %s110
      %p119 = scmp.eq.s32.totalorder %s22, 0
      %p120 = por %p118, %p119
      %p121 = scmp.ne.s32.totalorder %s109, %s110
      %p122 = scmp.eq.s32.totalorder %s23, 3
      %p123 = por %p121, %p122
      %p125 = scmp.ne.s32.totalorder %s110, %s124
      %p126 = scmp.eq.s32.totalorder %s23, 0
      %p127 = por %p125, %p126
      %s129 = sadd.s32 %s128, 1
      %p132 = scmp.eq.s32.totalorder %s17, 3
      %p133 = scmp.ne.s32.totalorder %s128, %s130
      %p134 = scmp.eq.s32.totalorder %s17, 0
      %p135 = por %p133, %p134
      %p136 = scmp.ne.s32.totalorder %s128, %s130
      %p137 = scmp.eq.s32.totalorder %s22, 3
      %p138 = por %p136, %p137
      %p139 = scmp.ne.s32.totalorder %s130, %s131
      %p140 = scmp.eq.s32.totalorder %s22, 0
      %p141 = por %p139, %p140
      %p142 = scmp.ne.s32.totalorder %s130, %s131
      %p143 = scmp.eq.s32.totalorder %s23, 3
      %p144 = por %p142, %p143
      %p146 = scmp.ne.s32.totalorder %s131, %s145
      %p147 = scmp.eq.s32.totalorder %s23, 0
      %p148 = por %p146, %p147
      %s149 = ssub.s32 %s24, %s36
      %s150 = ssub.s32 %s25, %s32
      %s151 = sor.u32 %s149, %s150
      %p152 = scmp.eq.s32.totalorder %s151, 0
      %s154 = sadd.s32 %s153, 1
      %s155 = scalar_select %p152, %s153, %s154
      %p158 = pneg %p152
      %p159 = scmp.eq.s32.totalorder %s17, 3
      %p160 = por %p158, %p159
      %p161 = scmp.ne.s32.totalorder %s153, %s156
      %p162 = scmp.eq.s32.totalorder %s17, 0
      %p163 = por %p161, %p162
      %p164 = scmp.ne.s32.totalorder %s153, %s156
      %p165 = scmp.eq.s32.totalorder %s22, 3
      %p166 = por %p164, %p165
      %p167 = scmp.ne.s32.totalorder %s156, %s157
      %p168 = scmp.eq.s32.totalorder %s22, 0
      %p169 = por %p167, %p168
      %p170 = scmp.ne.s32.totalorder %s156, %s157
      %p171 = scmp.eq.s32.totalorder %s23, 3
      %p172 = por %p170, %p171
      %p174 = scmp.ne.s32.totalorder %s157, %s173
      %p175 = scmp.eq.s32.totalorder %s23, 0
      %p176 = por %p174, %p175
      %p177 = scmp.le.s32.totalorder 1, %s17
      %p178 = scmp.lt.s32.totalorder %s17, 5
      %p179 = pnand %p177, %p178
      %p180 = pneg %p179
      // Predicated region
      $region9: #{tpu_custom_call.1} parent=5 // pred_check
        _
      $region10: #{tpu_custom_call.1} parent=5 // pred_check_branch
        %182 = sbr.rel (%p179) target = $region12
      $region11: #{tpu_custom_call.1} parent=5 // pred_region
        %s183 = ssub.s32 %s17, 1
        // Predicated region
        $region13: #{tpu_custom_call.1} parent=11 // pred_check
          %p184 = pneg %p78
        $region14: #{tpu_custom_call.1} parent=11 // pred_check_branch
          %186 = sbr.rel (%p184) target = $region16
        $region15: #{tpu_custom_call.1} parent=11 // pred_region
          _
        $region16: #{tpu_custom_call.1} parent=11 // pred_fallthru
          _
        // Predicated region
        $region17: #{tpu_custom_call.1} parent=11 // pred_check
          %p187 = pneg %p99
        $region18: #{tpu_custom_call.1} parent=11 // pred_check_branch
          %189 = sbr.rel (%p187) target = $region20
        $region19: #{tpu_custom_call.1} parent=11 // pred_region
          _
        $region20: #{tpu_custom_call.1} parent=11 // pred_fallthru
          _
        // Predicated region
        $region21: #{tpu_custom_call.1} parent=11 // pred_check
          %p190 = pneg %p120
        $region22: #{tpu_custom_call.1} parent=11 // pred_check_branch
          %192 = sbr.rel (%p190) target = $region24
        $region23: #{tpu_custom_call.1} parent=11 // pred_region
          _
        $region24: #{tpu_custom_call.1} parent=11 // pred_fallthru
          _
        // Predicated region
        $region25: #{tpu_custom_call.1} parent=11 // pred_check
          %p193 = pneg %p141
        $region26: #{tpu_custom_call.1} parent=11 // pred_check_branch
          %195 = sbr.rel (%p193) target = $region28
        $region27: #{tpu_custom_call.1} parent=11 // pred_region
          _
        $region28: #{tpu_custom_call.1} parent=11 // pred_fallthru
          _
      $region12: #{tpu_custom_call.1} parent=5 // pred_fallthru
        _
      %p196 = scmp.lt.s32.totalorder %s17, 4
      // Predicated region
      $region29: #{tpu_custom_call.1} parent=5 // pred_check
        %p197 = pneg %p196
      $region30: #{tpu_custom_call.1} parent=5 // pred_check_branch
        %199 = sbr.rel (%p197) target = $region32
      $region31: #{tpu_custom_call.1} parent=5 // pred_region
        // Predicated region
        $region33: #{tpu_custom_call.1} parent=31 // pred_check
          %p200 = pneg %p51
        $region34: #{tpu_custom_call.1} parent=31 // pred_check_branch
          %202 = sbr.rel (%p200) target = $region36
        $region35: #{tpu_custom_call.1} parent=31 // pred_region
          #allocation7 [shape = 'u32[6]{0}', space=smem, size = 0x18, scoped, tag = 'DMA stride descriptor']
          %s203 = sand.u32 %s41, 1
          %s204 = scalar_lea.sflag [#allocation3], %s203
          %s205 = sand.u32 %s41, 1
          %s206 = smul.addr %s205, 32
          %s207 = scalar_lea.vmem [#allocation2], %s206
          %209 = vsyncadd %s204, 0
          %s210 = smul.addr %s24, 4
          %s211 = sadd.s32 %s25, %s210
          %s212 = smul.addr %s211, 4
          %s213 = scalar_lea.hbm %s0, %s212
          %s215 = sshll.u32 1, 14
          %s216 = sxor.u32 4294967295, %s215
          %s218 = sld [smem:[#allocation0]]
          %s219 = sadd.s32 2, %s218
          %s221 = sshll.u32 7, 26
          %s222 = sxor.u32 4294967295, %s221
          %s223 = sand.u32 0, %s222
          %s224 = sshll.u32 %s219, 26
          %s225 = sor.u32 %s223, %s224
          %s226 = sshll.u32 %s213, 4
          %s227 = int_to_ptr.hbm [resolvable:$true] %s226
          %s228 = sshll.u32 %s207, 4
          %s229 = int_to_ptr.vmem [resolvable:$true] %s228
          %235 = sst [smem:[#allocation7]] 512
          %s236 = scalar_lea.smem [#allocation7], 1
          %237 = sst [smem:[%s236]] 128
          %s238 = scalar_lea.smem [#allocation7], 2
          %239 = sst [smem:[%s238]] 2
          %s240 = scalar_lea.smem [#allocation7], 3
          %241 = sst [smem:[%s240]] 128
          %s242 = scalar_lea.smem [#allocation7], 4
          %243 = sst [smem:[%s242]] 64
          %s244 = scalar_lea.smem [#allocation7], 5
          %245 = sst [smem:[%s244]] 4
          %247 = dma.general %s227, 512, %s229, %s204, [#allocation6], [#allocation7], %s225, 0
        $region36: #{tpu_custom_call.1} parent=31 // pred_fallthru
          _
      $region32: #{tpu_custom_call.1} parent=5 // pred_fallthru
        _
      %p248 = scmp.le.s32.totalorder 1, %s17
      %p249 = scmp.lt.s32.totalorder %s17, 5
      %p250 = pnand %p248, %p249
      %p251 = pneg %p250
      // Predicated region
      $region37: #{tpu_custom_call.1} parent=5 // pred_check
        _
      $region38: #{tpu_custom_call.1} parent=5 // pred_check_branch
        %253 = sbr.rel (%p250) target = $region40
      $region39: #{tpu_custom_call.1} parent=5 // pred_region
        %s254 = ssub.s32 %s17, 1
        %s255 = sand.u32 %s44, 1
        %s256 = scalar_lea.sflag [#allocation3], %s255
        %s257 = sand.u32 %s44, 1
        %s258 = smul.addr %s257, 32
        %s259 = scalar_lea.vmem [#allocation2], %s258
        // Predicated region
        $region41: #{tpu_custom_call.1} parent=39 // pred_check
          %p260 = pneg %p57
        $region42: #{tpu_custom_call.1} parent=39 // pred_check_branch
          %262 = sbr.rel (%p260) target = $region44
        $region43: #{tpu_custom_call.1} parent=39 // pred_region
          %264 = dma.done %s256, 512
        $region44: #{tpu_custom_call.1} parent=39 // pred_fallthru
          _
        %s265 = sand.u32 %s44, 1
        %s266 = scalar_lea.sflag [#allocation3], %s265
        %s267 = sand.u32 %s44, 1
        %s268 = smul.addr %s267, 32
        %s269 = scalar_lea.vmem [#allocation2], %s268
        %p270 = pneg %p57
        %p271 = pneg %p54
        %p272 = pneg %p78
        %p273 = pneg %p75
        %p274 = pneg %p99
        %p275 = pneg %p96
        %p276 = pneg %p120
        %p277 = pneg %p117
        %p278 = pneg %p141
        %p279 = pneg %p138
        %p280 = pneg %p169
        %p281 = pneg %p166
        %s282 = sand.u32 %s156, 1
        %s283 = scalar_lea.sflag [#allocation4], %s282
        %s284 = sand.u32 %s156, 1
        %s285 = smul.addr %s284, 64
        %s286 = scalar_lea.vmem [#allocation5], %s285
        %v288 = vld [vmem:[%s1] sm:$0xf]
        %v289 = vld [vmem:[%s1 + $0x4] sm:$0xf]
        %v290 = vld [vmem:[%s1 + $0x8] sm:$0xf]
        %v291 = vld [vmem:[%s1 + $0xc] sm:$0xf]
        %v292 = vld [vmem:[%s3] sm:$0xf]
        %v293 = vld [vmem:[%s3 + $0x4] sm:$0xf]
        %v294 = vld [vmem:[%s2] sm:$0xff]
        %v295 = vld [vmem:[%s2 + $0x8] sm:$0xff]
        %v296 = vld [vmem:[%s2 + $0x10] sm:$0xff]
        %v297 = vld [vmem:[%s2 + $0x18] sm:$0xff]
        %299 = vset.pattern.permute.xlu0 0
        %300 = vperm.xlu0 %299, %v294
        %v301 = vpop.permute.xlu0 %300
        %304 = vset.pattern.permute.xlu0 0
        %305 = vperm.xlu0 %304, %v295
        %v306 = vpop.permute.xlu0 %305
        %309 = vset.pattern.permute.xlu0 0
        %310 = vperm.xlu0 %309, %v296
        %v311 = vpop.permute.xlu0 %310
        %314 = vset.pattern.permute.xlu0 0
        %315 = vperm.xlu0 %314, %v297
        %v316 = vpop.permute.xlu0 %315
        %v318 = vld [vmem:[%s4] sm:$0xff]
        %v319 = vld [vmem:[%s4 + $0x8] sm:$0xff]
        %321 = vset.pattern.permute.xlu0 0
        %322 = vperm.xlu0 %321, %v318
        %v323 = vpop.permute.xlu0 %322
        %326 = vset.pattern.permute.xlu0 0
        %327 = vperm.xlu0 %326, %v319
        %v328 = vpop.permute.xlu0 %327
        %v330 = vld [vmem:[%s259] sm:$0xf]
        %v331 = vld [vmem:[%s259 + $0x4] sm:$0xf]
        %v332 = vunpack.c.l.bf16 %v330
        %v333 = vunpack.c.l.bf16 %v331
        %v334 = vmul.f32 %v332, 0.5
        %v335 = vmul.f32 %v333, 0.5
        %v336 = vadd.f32 %v334, 0.0
        %v337 = vadd.f32 %v335, 0.0
        %vm338 = vcmp.ge.f32.partialorder %v336, 1.0
        %vm339 = vcmp.ge.f32.partialorder %v337, 1.0
        %v340 = vsel %vm338, 1, 0
        %v341 = vsel %vm339, 1, 0
        %v342 = vcvt.s32.f32 %v340
        %v343 = vcvt.s32.f32 %v341
        %v344 = vpack.c.bf16 %v343, %v342
        %v345 = vsel %vm338, 0.0, %v336
        %v346 = vsel %vm339, 0.0, %v337
        %v351 = vunpack.c.l.b16 %v288
        %v352 = vunpack.c.l.b16 %v289
        %v353 = vunpack.c.l.b16 %v290
        %v354 = vunpack.c.l.b16 %v291
        %v355 = vpack.c.b16 %v352, %v351
        %v356 = vpack.c.b16 %v354, %v353
        %vm357 = vcmask 130048
        %v359 = vsel %vm357, %v355, 0
        %v362 = vsel %vm357, %v356, 0
        %364 = vmatpush.bf16.msra.mxu0 0
        %365 = vmatpush.bf16.msra.mxu0 0
        %366 = vmatpush.bf16.msra.mxu0 0
        %367 = vmatpush.bf16.msra.mxu0 0
        %368 = vmatpush.bf16.msra.mxu0 0
        %369 = vmatpush.bf16.msra.mxu0 0
        %370 = vmatpush.bf16.msra.mxu0 0
        %371 = vmatpush.bf16.msra.mxu0 %v344
        %372 = vmatmul.bf16.gmra.mxu0 %v359
        %v373 = vpop.f32.mrf.mxu0
        %v374 = vadd.f32 %v301, %v373
        %v375 = vpop.f32.mrf.mxu0
        %v376 = vadd.f32 %v306, %v375
        %377 = vmatmul.bf16.gmra.mxu0 %v362
        %v378 = vpop.f32.mrf.mxu0
        %v379 = vadd.f32 %v311, %v378
        %v380 = vpop.f32.mrf.mxu0
        %v381 = vadd.f32 %v316, %v380
        %382 = vdwg.mxu0
        %v383 = vmul.f32 %v374, 0.5
        %v384 = vmul.f32 %v376, 0.5
        %v385 = vmul.f32 %v379, 0.5
        %v386 = vmul.f32 %v381, 0.5
        %v387 = vadd.f32 %v383, 0.0
        %v388 = vadd.f32 %v384, 0.0
        %v389 = vadd.f32 %v385, 0.0
        %v390 = vadd.f32 %v386, 0.0
        %vm391 = vcmp.ge.f32.partialorder %v387, 1.0
        %vm392 = vcmp.ge.f32.partialorder %v388, 1.0
        %vm393 = vcmp.ge.f32.partialorder %v389, 1.0
        %vm394 = vcmp.ge.f32.partialorder %v390, 1.0
        %v395 = vsel %vm391, 1, 0
        %v396 = vsel %vm392, 1, 0
        %v397 = vsel %vm393, 1, 0
        %v398 = vsel %vm394, 1, 0
        %v399 = vcvt.s32.f32 %v395
        %v400 = vcvt.s32.f32 %v396
        %v401 = vcvt.s32.f32 %v397
        %v402 = vcvt.s32.f32 %v398
        %v403 = vpack.c.bf16 %v400, %v399
        %v404 = vpack.c.bf16 %v402, %v401
        %v405 = vsel %vm391, 0.0, %v387
        %v406 = vsel %vm392, 0.0, %v388
        %v407 = vsel %vm393, 0.0, %v389
        %v408 = vsel %vm394, 0.0, %v390
        %v411 = vunpack.c.l.b16 %v292
        %v412 = vunpack.c.l.b16 %v293
        %v413 = vpack.c.b16 %v412, %v411
        %vm414 = vcmask 261120
        %v416 = vsel %vm414, %v413, 0
        %418 = vmatpush.bf16.msra.mxu0 0
        %419 = vmatpush.bf16.msra.mxu0 0
        %420 = vmatpush.bf16.msra.mxu0 0
        %421 = vmatpush.bf16.msra.mxu0 0
        %422 = vmatpush.bf16.msra.mxu0 0
        %423 = vmatpush.bf16.msra.mxu0 0
        %424 = vmatpush.bf16.msra.mxu0 %v404
        %425 = vmatpush.bf16.msra.mxu0 %v403
        %426 = vmatmul.bf16.gmra.mxu0 %v416
        %v427 = vpop.f32.mrf.mxu0
        %v428 = vadd.f32 %v323, %v427
        %v429 = vpop.f32.mrf.mxu0
        %v430 = vadd.f32 %v328, %v429
        %431 = vdwg.mxu0
        %432 = vst [vmem:[%s286] sm:$0xff] %v428
        %433 = vst [vmem:[%s286 + $0x8] sm:$0xff] %v430
        %s434 = scalar_lea.vmem %s259, 8 [#allocation2]
        %v435 = vld [vmem:[%s434] sm:$0xf]
        %v436 = vld [vmem:[%s434 + $0x4] sm:$0xf]
        %v437 = vunpack.c.l.bf16 %v435
        %v438 = vunpack.c.l.bf16 %v436
        %v439 = vsub.f32 %v437, %v345
        %v440 = vsub.f32 %v438, %v346
        %v441 = vmul.f32 %v439, 0.5
        %v442 = vmul.f32 %v440, 0.5
        %v443 = vadd.f32 %v345, %v441
        %v444 = vadd.f32 %v346, %v442
        %vm445 = vcmp.ge.f32.partialorder %v443, 1.0
        %vm446 = vcmp.ge.f32.partialorder %v444, 1.0
        %v447 = vsel %vm445, 1, 0
        %v448 = vsel %vm446, 1, 0
        %v449 = vcvt.s32.f32 %v447
        %v450 = vcvt.s32.f32 %v448
        %v451 = vpack.c.bf16 %v450, %v449
        %v452 = vsel %vm445, 0.0, %v443
        %v453 = vsel %vm446, 0.0, %v444
        %454 = vmatpush.bf16.msra.mxu0 0
        %455 = vmatpush.bf16.msra.mxu0 0
        %456 = vmatpush.bf16.msra.mxu0 0
        %457 = vmatpush.bf16.msra.mxu0 0
        %458 = vmatpush.bf16.msra.mxu0 0
        %459 = vmatpush.bf16.msra.mxu0 0
        %460 = vmatpush.bf16.msra.mxu0 0
        %461 = vmatpush.bf16.msra.mxu0 %v451
        %462 = vmatmul.bf16.gmra.mxu0 %v359
        %v463 = vpop.f32.mrf.mxu0
        %v464 = vadd.f32 %v301, %v463
        %v465 = vpop.f32.mrf.mxu0
        %v466 = vadd.f32 %v306, %v465
        %467 = vmatmul.bf16.gmra.mxu0 %v362
        %v468 = vpop.f32.mrf.mxu0
        %v469 = vadd.f32 %v311, %v468
        %v470 = vpop.f32.mrf.mxu0
        %v471 = vadd.f32 %v316, %v470
        %472 = vdwg.mxu0
        %v473 = vsub.f32 %v464, %v405
        %v474 = vsub.f32 %v466, %v406
        %v475 = vsub.f32 %v469, %v407
        %v476 = vsub.f32 %v471, %v408
        %v477 = vmul.f32 %v473, 0.5
        %v478 = vmul.f32 %v474, 0.5
        %v479 = vmul.f32 %v475, 0.5
        %v480 = vmul.f32 %v476, 0.5
        %v481 = vadd.f32 %v405, %v477
        %v482 = vadd.f32 %v406, %v478
        %v483 = vadd.f32 %v407, %v479
        %v484 = vadd.f32 %v408, %v480
        %vm485 = vcmp.ge.f32.partialorder %v481, 1.0
        %vm486 = vcmp.ge.f32.partialorder %v482, 1.0
        %vm487 = vcmp.ge.f32.partialorder %v483, 1.0
        %vm488 = vcmp.ge.f32.partialorder %v484, 1.0
        %v489 = vsel %vm485, 1, 0
        %v490 = vsel %vm486, 1, 0
        %v491 = vsel %vm487, 1, 0
        %v492 = vsel %vm488, 1, 0
        %v493 = vcvt.s32.f32 %v489
        %v494 = vcvt.s32.f32 %v490
        %v495 = vcvt.s32.f32 %v491
        %v496 = vcvt.s32.f32 %v492
        %v497 = vpack.c.bf16 %v494, %v493
        %v498 = vpack.c.bf16 %v496, %v495
        %v499 = vsel %vm485, 0.0, %v481
        %v500 = vsel %vm486, 0.0, %v482
        %v501 = vsel %vm487, 0.0, %v483
        %v502 = vsel %vm488, 0.0, %v484
        %503 = vmatpush.bf16.msra.mxu0 0
        %504 = vmatpush.bf16.msra.mxu0 0
        %505 = vmatpush.bf16.msra.mxu0 0
        %506 = vmatpush.bf16.msra.mxu0 0
        %507 = vmatpush.bf16.msra.mxu0 0
        %508 = vmatpush.bf16.msra.mxu0 0
        %509 = vmatpush.bf16.msra.mxu0 %v498
        %510 = vmatpush.bf16.msra.mxu0 %v497
        %511 = vmatmul.bf16.gmra.mxu0 %v416
        %v512 = vpop.f32.mrf.mxu0
        %v513 = vadd.f32 %v323, %v512
        %v514 = vpop.f32.mrf.mxu0
        %v515 = vadd.f32 %v328, %v514
        %516 = vdwg.mxu0
        %s517 = scalar_lea.vmem %s286, 16 [#allocation5]
        %518 = vst [vmem:[%s517] sm:$0xff] %v513
        %519 = vst [vmem:[%s517 + $0x8] sm:$0xff] %v515
        %s520 = scalar_lea.vmem %s259, 16 [#allocation2]
        %v521 = vld [vmem:[%s520] sm:$0xf]
        %v522 = vld [vmem:[%s520 + $0x4] sm:$0xf]
        %v523 = vunpack.c.l.bf16 %v521
        %v524 = vunpack.c.l.bf16 %v522
        %v525 = vsub.f32 %v523, %v452
        %v526 = vsub.f32 %v524, %v453
        %v527 = vmul.f32 %v525, 0.5
        %v528 = vmul.f32 %v526, 0.5
        %v529 = vadd.f32 %v452, %v527
        %v530 = vadd.f32 %v453, %v528
        %vm531 = vcmp.ge.f32.partialorder %v529, 1.0
        %vm532 = vcmp.ge.f32.partialorder %v530, 1.0
        %v533 = vsel %vm531, 1, 0
        %v534 = vsel %vm532, 1, 0
        %v535 = vcvt.s32.f32 %v533
        %v536 = vcvt.s32.f32 %v534
        %v537 = vpack.c.bf16 %v536, %v535
        %v538 = vsel %vm531, 0.0, %v529
        %v539 = vsel %vm532, 0.0, %v530
        %540 = vmatpush.bf16.msra.mxu0 0
        %541 = vmatpush.bf16.msra.mxu0 0
        %542 = vmatpush.bf16.msra.mxu0 0
        %543 = vmatpush.bf16.msra.mxu0 0
        %544 = vmatpush.bf16.msra.mxu0 0
        %545 = vmatpush.bf16.msra.mxu0 0
        %546 = vmatpush.bf16.msra.mxu0 0
        %547 = vmatpush.bf16.msra.mxu0 %v537
        %548 = vmatmul.bf16.gmra.mxu0 %v359
        %v549 = vpop.f32.mrf.mxu0
        %v550 = vadd.f32 %v301, %v549
        %v551 = vpop.f32.mrf.mxu0
        %v552 = vadd.f32 %v306, %v551
        %553 = vmatmul.bf16.gmra.mxu0 %v362
        %v554 = vpop.f32.mrf.mxu0
        %v555 = vadd.f32 %v311, %v554
        %v556 = vpop.f32.mrf.mxu0
        %v557 = vadd.f32 %v316, %v556
        %558 = vdwg.mxu0
        %v559 = vsub.f32 %v550, %v499
        %v560 = vsub.f32 %v552, %v500
        %v561 = vsub.f32 %v555, %v501
        %v562 = vsub.f32 %v557, %v502
        %v563 = vmul.f32 %v559, 0.5
        %v564 = vmul.f32 %v560, 0.5
        %v565 = vmul.f32 %v561, 0.5
        %v566 = vmul.f32 %v562, 0.5
        %v567 = vadd.f32 %v499, %v563
        %v568 = vadd.f32 %v500, %v564
        %v569 = vadd.f32 %v501, %v565
        %v570 = vadd.f32 %v502, %v566
        %vm571 = vcmp.ge.f32.partialorder %v567, 1.0
        %vm572 = vcmp.ge.f32.partialorder %v568, 1.0
        %vm573 = vcmp.ge.f32.partialorder %v569, 1.0
        %vm574 = vcmp.ge.f32.partialorder %v570, 1.0
        %v575 = vsel %vm571, 1, 0
        %v576 = vsel %vm572, 1, 0
        %v577 = vsel %vm573, 1, 0
        %v578 = vsel %vm574, 1, 0
        %v579 = vcvt.s32.f32 %v575
        %v580 = vcvt.s32.f32 %v576
        %v581 = vcvt.s32.f32 %v577
        %v582 = vcvt.s32.f32 %v578
        %v583 = vpack.c.bf16 %v580, %v579
        %v584 = vpack.c.bf16 %v582, %v581
        %v585 = vsel %vm571, 0.0, %v567
        %v586 = vsel %vm572, 0.0, %v568
        %v587 = vsel %vm573, 0.0, %v569
        %v588 = vsel %vm574, 0.0, %v570
        %589 = vmatpush.bf16.msra.mxu0 0
        %590 = vmatpush.bf16.msra.mxu0 0
        %591 = vmatpush.bf16.msra.mxu0 0
        %592 = vmatpush.bf16.msra.mxu0 0
        %593 = vmatpush.bf16.msra.mxu0 0
        %594 = vmatpush.bf16.msra.mxu0 0
        %595 = vmatpush.bf16.msra.mxu0 %v584
        %596 = vmatpush.bf16.msra.mxu0 %v583
        %597 = vmatmul.bf16.gmra.mxu0 %v416
        %v598 = vpop.f32.mrf.mxu0
        %v599 = vadd.f32 %v323, %v598
        %v600 = vpop.f32.mrf.mxu0
        %v601 = vadd.f32 %v328, %v600
        %602 = vdwg.mxu0
        %s603 = scalar_lea.vmem %s286, 32 [#allocation5]
        %604 = vst [vmem:[%s603] sm:$0xff] %v599
        %605 = vst [vmem:[%s603 + $0x8] sm:$0xff] %v601
        %s606 = scalar_lea.vmem %s259, 24 [#allocation2]
        %v607 = vld [vmem:[%s606] sm:$0xf]
        %v608 = vld [vmem:[%s606 + $0x4] sm:$0xf]
        %v609 = vunpack.c.l.bf16 %v607
        %v610 = vunpack.c.l.bf16 %v608
        %v611 = vsub.f32 %v609, %v538
        %v612 = vsub.f32 %v610, %v539
        %v613 = vmul.f32 %v611, 0.5
        %v614 = vmul.f32 %v612, 0.5
        %v615 = vadd.f32 %v538, %v613
        %v616 = vadd.f32 %v539, %v614
        %vm617 = vcmp.ge.f32.partialorder %v615, 1.0
        %vm618 = vcmp.ge.f32.partialorder %v616, 1.0
        %v619 = vsel %vm617, 1, 0
        %v620 = vsel %vm618, 1, 0
        %v621 = vcvt.s32.f32 %v619
        %v622 = vcvt.s32.f32 %v620
        %v623 = vpack.c.bf16 %v622, %v621
        %624 = vmatpush.bf16.msra.mxu0 0
        %625 = vmatpush.bf16.msra.mxu0 0
        %626 = vmatpush.bf16.msra.mxu0 0
        %627 = vmatpush.bf16.msra.mxu0 0
        %628 = vmatpush.bf16.msra.mxu0 0
        %629 = vmatpush.bf16.msra.mxu0 0
        %630 = vmatpush.bf16.msra.mxu0 0
        %631 = vmatpush.bf16.msra.mxu0 %v623
        %632 = vmatmul.bf16.gmra.mxu0 %v359
        %v633 = vpop.f32.mrf.mxu0
        %v634 = vadd.f32 %v301, %v633
        %v635 = vpop.f32.mrf.mxu0
        %v636 = vadd.f32 %v306, %v635
        %637 = vmatmul.bf16.gmra.mxu0 %v362
        %v638 = vpop.f32.mrf.mxu0
        %v639 = vadd.f32 %v311, %v638
        %v640 = vpop.f32.mrf.mxu0
        %v641 = vadd.f32 %v316, %v640
        %642 = vdwg.mxu0
        %v643 = vsub.f32 %v634, %v585
        %v644 = vsub.f32 %v636, %v586
        %v645 = vsub.f32 %v639, %v587
        %v646 = vsub.f32 %v641, %v588
        %v647 = vmul.f32 %v643, 0.5
        %v648 = vmul.f32 %v644, 0.5
        %v649 = vmul.f32 %v645, 0.5
        %v650 = vmul.f32 %v646, 0.5
        %v651 = vadd.f32 %v585, %v647
        %v652 = vadd.f32 %v586, %v648
        %v653 = vadd.f32 %v587, %v649
        %v654 = vadd.f32 %v588, %v650
        %vm655 = vcmp.ge.f32.partialorder %v651, 1.0
        %vm656 = vcmp.ge.f32.partialorder %v652, 1.0
        %vm657 = vcmp.ge.f32.partialorder %v653, 1.0
        %vm658 = vcmp.ge.f32.partialorder %v654, 1.0
        %v659 = vsel %vm655, 1, 0
        %v660 = vsel %vm656, 1, 0
        %v661 = vsel %vm657, 1, 0
        %v662 = vsel %vm658, 1, 0
        %v663 = vcvt.s32.f32 %v659
        %v664 = vcvt.s32.f32 %v660
        %v665 = vcvt.s32.f32 %v661
        %v666 = vcvt.s32.f32 %v662
        %v667 = vpack.c.bf16 %v664, %v663
        %v668 = vpack.c.bf16 %v666, %v665
        %669 = vmatpush.bf16.msra.mxu0 0
        %670 = vmatpush.bf16.msra.mxu0 0
        %671 = vmatpush.bf16.msra.mxu0 0
        %672 = vmatpush.bf16.msra.mxu0 0
        %673 = vmatpush.bf16.msra.mxu0 0
        %674 = vmatpush.bf16.msra.mxu0 0
        %675 = vmatpush.bf16.msra.mxu0 %v668
        %676 = vmatpush.bf16.msra.mxu0 %v667
        %677 = vmatmul.bf16.gmra.mxu0 %v416
        %v678 = vpop.f32.mrf.mxu0
        %v679 = vadd.f32 %v323, %v678
        %v680 = vpop.f32.mrf.mxu0
        %v681 = vadd.f32 %v328, %v680
        %682 = vdwg.mxu0
        %s683 = scalar_lea.vmem %s286, 48 [#allocation5]
        %684 = vst [vmem:[%s683] sm:$0xff] %v679
        %685 = vst [vmem:[%s683 + $0x8] sm:$0xff] %v681
        %s686 = sand.u32 %s156, 1
        %s687 = scalar_lea.sflag [#allocation4], %s686
        %s688 = sand.u32 %s156, 1
        %s689 = smul.addr %s688, 64
        %s690 = scalar_lea.vmem [#allocation5], %s689
        // Predicated region
        $region45: #{tpu_custom_call.1} parent=39 // pred_check
          %p691 = pneg %p166
        $region46: #{tpu_custom_call.1} parent=39 // pred_check_branch
          %693 = sbr.rel (%p691) target = $region48
        $region47: #{tpu_custom_call.1} parent=39 // pred_region
          #allocation9 [shape = 'u32[6]{0}', space=smem, size = 0x18, scoped, tag = 'DMA stride descriptor']
          %695 = vsyncadd %s687, 0
          %s696 = smul.addr %s26, 4
          %s697 = sadd.s32 %s27, %s696
          %s698 = smul.addr %s697, 8
          %s699 = scalar_lea.hbm %s5, %s698
          %s701 = sshll.u32 1, 14
          %s702 = sxor.u32 4294967295, %s701
          %s705 = sshll.u32 7, 18
          %s706 = sxor.u32 4294967295, %s705
          %s707 = sand.u32 0, %s706
          %s709 = sor.u32 %s707, 0
          %s710 = sshll.u32 %s690, 4
          %s711 = int_to_ptr.vmem [resolvable:$true] %s710
          %s712 = sshll.u32 %s699, 4
          %s713 = int_to_ptr.hbm [resolvable:$true] %s712
          %719 = sst [smem:[#allocation9]] 256
          %s720 = scalar_lea.smem [#allocation9], 1
          %721 = sst [smem:[%s720]] 1024
          %s722 = scalar_lea.smem [#allocation9], 2
          %723 = sst [smem:[%s722]] 2
          %s724 = scalar_lea.smem [#allocation9], 3
          %725 = sst [smem:[%s724]] 128
          %s726 = scalar_lea.smem [#allocation9], 4
          %727 = sst [smem:[%s726]] 256
          %s728 = scalar_lea.smem [#allocation9], 5
          %729 = sst [smem:[%s728]] 8
          %731 = dma.general %s711, 1024, %s713, %s687, [#allocation8], [#allocation9], %s709, 0
        $region48: #{tpu_custom_call.1} parent=39 // pred_fallthru
          _
      $region40: #{tpu_custom_call.1} parent=5 // pred_fallthru
        _
      %p732 = scmp.le.s32.totalorder 2, %s17
      // Predicated region
      $region49: #{tpu_custom_call.1} parent=5 // pred_check
        %p733 = pneg %p732
      $region50: #{tpu_custom_call.1} parent=5 // pred_check_branch
        %735 = sbr.rel (%p733) target = $region52
      $region51: #{tpu_custom_call.1} parent=5 // pred_region
        %s736 = ssub.s32 %s17, 2
        // Predicated region
        $region53: #{tpu_custom_call.1} parent=51 // pred_check
          %p737 = pneg %p172
        $region54: #{tpu_custom_call.1} parent=51 // pred_check_branch
          %739 = sbr.rel (%p737) target = $region56
        $region55: #{tpu_custom_call.1} parent=51 // pred_region
          %s740 = sand.u32 %s157, 1
          %s741 = scalar_lea.sflag [#allocation4], %s740
          %s742 = sand.u32 %s157, 1
          %s743 = smul.addr %s742, 64
          %s744 = scalar_lea.vmem [#allocation5], %s743
          %746 = dma.done %s741, 1024
        $region56: #{tpu_custom_call.1} parent=51 // pred_fallthru
          _
      $region52: #{tpu_custom_call.1} parent=5 // pred_fallthru
        _
    $region6: #{tpu_custom_call.1} parent=1 // loop_footer
      %s21 = sadd.s32 1, %s17
    $region7: #{tpu_custom_call.1} parent=1 // loop_footer_branch
      %16 = sbr.rel target = $region3
    $region8: #{tpu_custom_call.1} parent=1 // loop_exit
      _
    %747 = vsyncpa [#allocation3], 1
    %s748 = scalar_lea.sflag [#allocation3], 1
    %749 = vsyncpa %s748, 1
    %750 = vsyncpa [#allocation4], 1
    %s751 = scalar_lea.sflag [#allocation4], 1
    %752 = vsyncpa %s751, 1

</llo_original>
